<compile_context>
chip_gen: v6e
topology: v6e:2x2x1
jax: 0.10.0
libtpu: 0.0.40
codegen_flags: <defaults>
</compile_context>

<pallas_src>
import functools

import jax
import jax.numpy as jnp
from jax import lax
from jax.experimental import pallas as pl
from jax.experimental.pallas import tpu as pltpu


def _round_up(x: int, m: int) -> int:
    return (x + m - 1) // m * m


def _mlp_kernel(num_layers, x_ref, w1_ref, wh_ref, wl_ref, b_ref, o_ref):
    """Fused MLP forward in transposed (batch-on-lanes) layout.

    x_ref:  [d, TB]           input tile (batch on lanes)
    w1_ref: [H, d]            first-layer weight
    wh_ref: [max(L,1), H, H]  hidden-layer weights
    wl_ref: [1, H]            last-layer weight (row vector)
    b_ref:  [L+2, H, 1]       packed biases: [0]=b1, [1..L]=hidden, [L+1,0,0]=last
    o_ref:  [1, TB]           lane-dense output row
    """
    # First layer: [H, d] @ [d, TB] + [H, 1]  -> ReLU  (activation_function)
    h = jnp.dot(w1_ref[...], x_ref[...], preferred_element_type=jnp.float32)
    h = jnp.maximum(h + b_ref[0], 0.0)

    # Hidden layers: [H, H] @ [H, TB] + [H, 1] -> ReLU
    if num_layers <= 4:
        for l in range(num_layers):  # small static unroll
            h = jnp.dot(wh_ref[l], h, preferred_element_type=jnp.float32)
            h = jnp.maximum(h + b_ref[l + 1], 0.0)
    else:
        def body(l, h):
            h = jnp.dot(wh_ref[l], h, preferred_element_type=jnp.float32)
            return jnp.maximum(h + b_ref[l + 1], 0.0)
        h = lax.fori_loop(0, num_layers, body, h)

    # Last layer: [1, H] @ [H, TB] + last_bias -> lane-dense [1, TB] store.
    b_last = b_ref[num_layers + 1][0:1, :]  # [1, 1]
    o_ref[...] = jnp.dot(wl_ref[...], h, preferred_element_type=jnp.float32) + b_last


def nos_mlp_forward(x, params, num_layers, *, batch_tile=512):
    """Run the fused NOS MLP kernel.

    x:      [B, d] float32 (PyTorch layout; transposed internally)
    params: dict with w_first [H,d], w_hidden [max(L,1),H,H], w_last [1,H],
            b_stack [L+2,H,1]
    returns [B, 1] float32
    """
    B, d = x.shape
    H = params["w_first"].shape[0]
    Lh = params["w_hidden"].shape[0]

    # Lane-axis batch tile: multiple of 128 (v5e MXU), capped at 512 (multiple
    # of the 256-wide v6e/v7x MXU); pad B up to a whole number of tiles.
    B_pad = _round_up(max(B, 1), 128)
    tb = min(batch_tile, B_pad)
    B_pad = _round_up(B_pad, tb)

    x_t = jnp.zeros((d, B_pad), jnp.float32).at[:, :B].set(
        x.astype(jnp.float32).T)

    kernel = functools.partial(_mlp_kernel, num_layers)
    out_t = pl.pallas_call(
        kernel,
        out_shape=jax.ShapeDtypeStruct((1, B_pad), jnp.float32),
        grid=(B_pad // tb,),
        in_specs=[
            pl.BlockSpec((d, tb), lambda i: (0, i)),            # x tile (pipelined)
            pl.BlockSpec((H, d), lambda i: (0, 0)),              # resident weights
            pl.BlockSpec((Lh, H, H), lambda i: (0, 0, 0)),
            pl.BlockSpec((1, H), lambda i: (0, 0)),
            pl.BlockSpec((num_layers + 2, H, 1), lambda i: (0, 0, 0)),
        ],
        out_specs=pl.BlockSpec((1, tb), lambda i: (0, i)),       # lane-dense out
        compiler_params=pltpu.CompilerParams(
            dimension_semantics=("parallel",),   # megacore / dual-TC on v7x
            vmem_limit_bytes=32 * 1024 * 1024,   # explicit; fits v7x 64 MiB/TC
        ),
    )(x_t, params["w_first"], params["w_hidden"], params["w_last"],
      params["b_stack"])

    return out_t[:, :B].T  # [B, 1]


def init_params(key, d, last_bias, num_layers):
    """Parameter init matching the module: xavier_uniform weights, default
    nn.Linear bias init U(-1/sqrt(fan_in), 1/sqrt(fan_in)), last bias constant.
    Weights stored [out_features, in_features]; biases packed as [L+2, H, 1]."""
    H = 20 + d

    def xavier(key, fan_in, fan_out):
        bound = (6.0 / (fan_in + fan_out)) ** 0.5
        return jax.random.uniform(key, (fan_out, fan_in),
                                  minval=-bound, maxval=bound,
                                  dtype=jnp.float32)

    def bias_col(key, fan_in, fan_out):
        bound = 1.0 / (fan_in ** 0.5)
        return jax.random.uniform(key, (fan_out, 1),
                                  minval=-bound, maxval=bound,
                                  dtype=jnp.float32)

    n_keys = 2 + 2 * num_layers + 1
    keys = jax.random.split(key, max(n_keys, 3))

    w_first = xavier(keys[0], d, H)
    b_stack = jnp.zeros((num_layers + 2, H, 1), jnp.float32)
    b_stack = b_stack.at[0].set(bias_col(keys[1], d, H))

    wh_list = []
    for l in range(num_layers):
        wh_list.append(xavier(keys[2 + 2 * l], H, H))
        b_stack = b_stack.at[1 + l].set(bias_col(keys[3 + 2 * l], H, H))
    w_hidden = (jnp.stack(wh_list) if wh_list
                else jnp.zeros((1, H, H), jnp.float32))  # dummy slice if L == 0

    w_last = xavier(keys[-1], H, 1)                       # [1, H]
    b_stack = b_stack.at[num_layers + 1, 0, 0].set(float(last_bias))

    return {"w_first": w_first, "w_hidden": w_hidden,
            "w_last": w_last, "b_stack": b_stack}


def reference_forward(x, params, num_layers):
    """Pure-JAX reference for correctness check (same transposed math)."""
    h = x.astype(jnp.float32).T
    h = jnp.maximum(params["w_first"] @ h + params["b_stack"][0], 0.0)
    for l in range(num_layers):
        h = jnp.maximum(params["w_hidden"][l] @ h + params["b_stack"][l + 1], 0.0)
    out = params["w_last"] @ h + params["b_stack"][num_layers + 1, 0, 0]
    return out.T  # [B, 1]


if __name__ == "__main__":
    d = 4            # input dimension  -> hidden = 20 + d = 24
    num_layers = 2   # number of extra hidden Linear+activation blocks
    last_bias = 2.0  # constant bias of final Linear
    B = 8            # batch size

    key = jax.random.PRNGKey(0)
    k_params, k_x = jax.random.split(key)

    params = init_params(k_params, d, last_bias, num_layers)
    x = jax.random.normal(k_x, (B, d), dtype=jnp.float32)

    out = jax.block_until_ready(nos_mlp_forward(x, params, num_layers))
    ref = reference_forward(x, params, num_layers)

    assert out.shape == (B, 1)
    assert jnp.allclose(out, ref, atol=1e-5, rtol=1e-5), "mismatch vs reference"

    print("KERNEL_OK")
</pallas_src>

<mosaic_0001>
module attributes {stable_mosaic.version = 11 : i64} {
  func.func @_mlp_kernel(%arg0: i32, %arg1: memref<4x128xf32, #tpu.memory_space<vmem>>, %arg2: memref<24x4xf32, #tpu.memory_space<vmem>>, %arg3: memref<2x24x24xf32, #tpu.memory_space<vmem>>, %arg4: memref<1x24xf32, #tpu.memory_space<vmem>>, %arg5: memref<4x24x1xf32, #tpu.memory_space<vmem>>, %arg6: memref<1x128xf32, #tpu.memory_space<vmem>>) attributes {dimension_semantics = [#tpu.dimension_semantics<parallel>], iteration_bounds = array<i64: 1>, scalar_prefetch = 0 : i64, scratch_operands = 0 : i64, tpu.core_type = #tpu.core_type<tc>, window_params = [{transform_indices = @transform_0, window_bounds = array<i64: 4, 128>}, {pipeline_mode = #tpu.pipeline_mode<synchronous>, transform_indices = @transform_1, window_bounds = array<i64: 24, 4>}, {pipeline_mode = #tpu.pipeline_mode<synchronous>, transform_indices = @transform_2, window_bounds = array<i64: 2, 24, 24>}, {pipeline_mode = #tpu.pipeline_mode<synchronous>, transform_indices = @transform_3, window_bounds = array<i64: 1, 24>}, {pipeline_mode = #tpu.pipeline_mode<synchronous>, transform_indices = @transform_4, window_bounds = array<i64: 4, 24, 1>}, {transform_indices = @transform_5, window_bounds = array<i64: 1, 128>}]} {
    %c0 = arith.constant 0 : index
    %c0_0 = arith.constant 0 : index
    %0 = vector.load %arg2[%c0, %c0_0] : memref<24x4xf32, #tpu.memory_space<vmem>>, vector<24x4xf32>
    %c0_1 = arith.constant 0 : index
    %c0_2 = arith.constant 0 : index
    %1 = vector.load %arg1[%c0_1, %c0_2] : memref<4x128xf32, #tpu.memory_space<vmem>>, vector<4x128xf32>
    %cst = arith.constant dense<0.000000e+00> : vector<24x128xf32>
    %2 = tpu.matmul %0, %1, %cst {dimension_numbers = #tpu.dot_dimension_numbers<[1], [0], [0], [1], [0, 0, 1, 1], [], []>} : vector<24x4xf32>, vector<4x128xf32>, vector<24x128xf32> -> vector<24x128xf32>
    %c0_3 = arith.constant 0 : index
    %c0_4 = arith.constant 0 : index
    %c0_5 = arith.constant 0 : index
    %3 = vector.load %arg5[%c0_3, %c0_4, %c0_5] : memref<4x24x1xf32, #tpu.memory_space<vmem>>, vector<1x24x1xf32>
    %4 = vector.shape_cast %3 : vector<1x24x1xf32> to vector<24x1xf32>
    %5 = vector.broadcast %4 : vector<24x1xf32> to vector<24x128xf32>
    %6 = arith.addf %2, %5 : vector<24x128xf32>
    %cst_6 = arith.constant 0.000000e+00 : f32
    %7 = vector.broadcast %cst_6 : f32 to vector<24x128xf32>
    %8 = arith.maximumf %6, %7 : vector<24x128xf32>
    %c0_7 = arith.constant 0 : index
    %c0_8 = arith.constant 0 : index
    %c0_9 = arith.constant 0 : index
    %9 = vector.load %arg3[%c0_7, %c0_8, %c0_9] : memref<2x24x24xf32, #tpu.memory_space<vmem>>, vector<1x24x24xf32>
    %10 = vector.shape_cast %9 : vector<1x24x24xf32> to vector<24x24xf32>
    %cst_10 = arith.constant dense<0.000000e+00> : vector<24x128xf32>
    %11 = tpu.matmul %10, %8, %cst_10 {dimension_numbers = #tpu.dot_dimension_numbers<[1], [0], [0], [1], [0, 0, 1, 1], [], []>} : vector<24x24xf32>, vector<24x128xf32>, vector<24x128xf32> -> vector<24x128xf32>
    %c1 = arith.constant 1 : index
    %c0_11 = arith.constant 0 : index
    %c0_12 = arith.constant 0 : index
    %12 = vector.load %arg5[%c1, %c0_11, %c0_12] : memref<4x24x1xf32, #tpu.memory_space<vmem>>, vector<1x24x1xf32>
    %13 = vector.shape_cast %12 : vector<1x24x1xf32> to vector<24x1xf32>
    %14 = vector.broadcast %13 : vector<24x1xf32> to vector<24x128xf32>
    %15 = arith.addf %11, %14 : vector<24x128xf32>
    %cst_13 = arith.constant 0.000000e+00 : f32
    %16 = vector.broadcast %cst_13 : f32 to vector<24x128xf32>
    %17 = arith.maximumf %15, %16 : vector<24x128xf32>
    %c1_14 = arith.constant 1 : index
    %c0_15 = arith.constant 0 : index
    %c0_16 = arith.constant 0 : index
    %18 = vector.load %arg3[%c1_14, %c0_15, %c0_16] : memref<2x24x24xf32, #tpu.memory_space<vmem>>, vector<1x24x24xf32>
    %19 = vector.shape_cast %18 : vector<1x24x24xf32> to vector<24x24xf32>
    %cst_17 = arith.constant dense<0.000000e+00> : vector<24x128xf32>
    %20 = tpu.matmul %19, %17, %cst_17 {dimension_numbers = #tpu.dot_dimension_numbers<[1], [0], [0], [1], [0, 0, 1, 1], [], []>} : vector<24x24xf32>, vector<24x128xf32>, vector<24x128xf32> -> vector<24x128xf32>
    %c2 = arith.constant 2 : index
    %c0_18 = arith.constant 0 : index
    %c0_19 = arith.constant 0 : index
    %21 = vector.load %arg5[%c2, %c0_18, %c0_19] : memref<4x24x1xf32, #tpu.memory_space<vmem>>, vector<1x24x1xf32>
    %22 = vector.shape_cast %21 : vector<1x24x1xf32> to vector<24x1xf32>
    %23 = vector.broadcast %22 : vector<24x1xf32> to vector<24x128xf32>
    %24 = arith.addf %20, %23 : vector<24x128xf32>
    %cst_20 = arith.constant 0.000000e+00 : f32
    %25 = vector.broadcast %cst_20 : f32 to vector<24x128xf32>
    %26 = arith.maximumf %24, %25 : vector<24x128xf32>
    %c3 = arith.constant 3 : index
    %c0_21 = arith.constant 0 : index
    %c0_22 = arith.constant 0 : index
    %27 = vector.load %arg5[%c3, %c0_21, %c0_22] : memref<4x24x1xf32, #tpu.memory_space<vmem>>, vector<1x24x1xf32>
    %28 = vector.shape_cast %27 : vector<1x24x1xf32> to vector<24x1xf32>
    %29 = vector.extract_strided_slice %28 {offsets = [0, 0], sizes = [1, 1], strides = [1, 1]} : vector<24x1xf32> to vector<1x1xf32>
    %c0_23 = arith.constant 0 : index
    %c0_24 = arith.constant 0 : index
    %30 = vector.load %arg4[%c0_23, %c0_24] : memref<1x24xf32, #tpu.memory_space<vmem>>, vector<1x24xf32>
    %cst_25 = arith.constant dense<0.000000e+00> : vector<1x128xf32>
    %31 = tpu.matmul %30, %26, %cst_25 {dimension_numbers = #tpu.dot_dimension_numbers<[1], [0], [0], [1], [0, 0, 1, 1], [], []>} : vector<1x24xf32>, vector<24x128xf32>, vector<1x128xf32> -> vector<1x128xf32>
    %32 = vector.broadcast %29 : vector<1x1xf32> to vector<1x128xf32>
    %33 = arith.addf %31, %32 : vector<1x128xf32>
    %c0_26 = arith.constant 0 : index
    %c0_27 = arith.constant 0 : index
    %34 = vector.load %arg6[%c0_26, %c0_27] : memref<1x128xf32, #tpu.memory_space<vmem>>, vector<1x128xf32>
    tpu.vector_store %arg6[%c0_26, %c0_27], %33 {strides = array<i32>} : memref<1x128xf32, #tpu.memory_space<vmem>>, vector<1x128xf32>,
    return
  }
  func.func @transform_0(%arg0: i32) -> (i32, i32) {
    %c0_i32 = arith.constant 0 : i32
    %c0_i32_0 = arith.constant 0 : i32
    return %c0_i32, %arg0 : i32, i32
  }
  func.func @transform_1(%arg0: i32) -> (i32, i32) {
    %c0_i32 = arith.constant 0 : i32
    %c0_i32_0 = arith.constant 0 : i32
    %c0_i32_1 = arith.constant 0 : i32
    return %c0_i32, %c0_i32_0 : i32, i32
  }
  func.func @transform_2(%arg0: i32) -> (i32, i32, i32) {
    %c0_i32 = arith.constant 0 : i32
    %c0_i32_0 = arith.constant 0 : i32
    %c0_i32_1 = arith.constant 0 : i32
    %c0_i32_2 = arith.constant 0 : i32
    return %c0_i32, %c0_i32_0, %c0_i32_1 : i32, i32, i32
  }
  func.func @transform_3(%arg0: i32) -> (i32, i32) {
    %c0_i32 = arith.constant 0 : i32
    %c0_i32_0 = arith.constant 0 : i32
    %c0_i32_1 = arith.constant 0 : i32
    return %c0_i32, %c0_i32_0 : i32, i32
  }
  func.func @transform_4(%arg0: i32) -> (i32, i32, i32) {
    %c0_i32 = arith.constant 0 : i32
    %c0_i32_0 = arith.constant 0 : i32
    %c0_i32_1 = arith.constant 0 : i32
    %c0_i32_2 = arith.constant 0 : i32
    return %c0_i32, %c0_i32_0, %c0_i32_1 : i32, i32, i32
  }
  func.func @transform_5(%arg0: i32) -> (i32, i32) {
    %c0_i32 = arith.constant 0 : i32
    %c0_i32_0 = arith.constant 0 : i32
    return %c0_i32, %arg0 : i32, i32
  }
}

</mosaic_0001>

<llo_original>
// kernel: tpu_custom_call.1
$region0: #{tpu_custom_call.1}
  #allocation0 [shape = 'u32[]', space=smem, size = 0x4, offset = 0x4, fixed_abs, tag = 'smem constant byte address 0x4 - core index']
  #allocation1 [shape = 'u32[144,128]{1,0:T(1,128)}', space=vmem, size = 0x12000, scoped, tag = 'internal scratch']
  %s0 = inlined_call_operand.vmem [shape: f32[4,128], index: 0, kind: input, shape index: {}]
  %s1 = inlined_call_operand.vmem [shape: f32[24,4], index: 1, kind: input, shape index: {}]
  %s2 = inlined_call_operand.vmem [shape: f32[2,24,24], index: 2, kind: input, shape index: {}]
  %s3 = inlined_call_operand.vmem [shape: f32[1,24], index: 3, kind: input, shape index: {}]
  %s4 = inlined_call_operand.vmem [shape: f32[4,24,1], index: 4, kind: input, shape index: {}]
  %s5 = inlined_call_operand.hbm [shape: f32[1,128], index: 5, kind: output, shape index: {}]
  %s6 = sld [smem:[#allocation0]]
  $region30: #{tpu_custom_call.1} parent=0
    _
  %s8 = ssub.s32 1, %s6
  %s9 = scalar_select 0, %s8, %s6
  $region1: #{tpu_custom_call.1} parent=0
    #allocation2 [shape = 'u8[512]{0}', space=vmem, size = 0x400, scoped, tag = 'output window, operand 0, single buffered']
    #allocation3 [shape = 's32[1]{0}', space=sflag, size = 0x4, scoped, tag = 'scoped memory for tpu_custom_call.1']
    %10 = vsyncpa [#allocation3], 0
    // Predicated region
    $region2: #{tpu_custom_call.1} parent=1 // pred_check
      _
    $region3: #{tpu_custom_call.1} parent=1 // pred_check_branch
      %12 = sbr.rel (0) target = $region5
    $region4: #{tpu_custom_call.1} parent=1 // pred_region
      _
    $region5: #{tpu_custom_call.1} parent=1 // pred_fallthru
      _
    // Predicated region
    $region6: #{tpu_custom_call.1} parent=1 // pred_check
      _
    $region7: #{tpu_custom_call.1} parent=1 // pred_check_branch
      %14 = sbr.rel (0) target = $region9
    $region8: #{tpu_custom_call.1} parent=1 // pred_region
      _
    $region9: #{tpu_custom_call.1} parent=1 // pred_fallthru
      _
    // Predicated region
    $region10: #{tpu_custom_call.1} parent=1 // pred_check
      _
    $region11: #{tpu_custom_call.1} parent=1 // pred_check_branch
      %16 = sbr.rel (0) target = $region13
    $region12: #{tpu_custom_call.1} parent=1 // pred_region
      _
    $region13: #{tpu_custom_call.1} parent=1 // pred_fallthru
      _
    // Predicated region
    $region14: #{tpu_custom_call.1} parent=1 // pred_check
      _
    $region15: #{tpu_custom_call.1} parent=1 // pred_check_branch
      %18 = sbr.rel (0) target = $region17
    $region16: #{tpu_custom_call.1} parent=1 // pred_region
      _
    $region17: #{tpu_custom_call.1} parent=1 // pred_fallthru
      _
    // Predicated region
    $region18: #{tpu_custom_call.1} parent=1 // pred_check
      _
    $region19: #{tpu_custom_call.1} parent=1 // pred_check_branch
      %20 = sbr.rel (0) target = $region21
    $region20: #{tpu_custom_call.1} parent=1 // pred_region
      _
    $region21: #{tpu_custom_call.1} parent=1 // pred_fallthru
      _
    %v21 = vld [vmem:[%s1] sm:$0xff]
    %v22 = vld [vmem:[%s1 + $0x8] sm:$0xff]
    %v23 = vld [vmem:[%s1 + $0x10] sm:$0xff]
    %v24 = vld [vmem:[%s0] sm:$0xf]
    %v25 = vld [vmem:[%s4] sm:$0xff]
    %v26 = vld [vmem:[%s4 + $0x8] sm:$0xff]
    %v27 = vld [vmem:[%s4 + $0x10] sm:$0xff]
    %29 = vset.pattern.permute.xlu0 0
    %30 = vperm.xlu0 %29, %v25
    %v31 = vpop.permute.xlu0 %30
    %34 = vset.pattern.permute.xlu0 0
    %35 = vperm.xlu0 %34, %v26
    %v36 = vpop.permute.xlu0 %35
    %39 = vset.pattern.permute.xlu0 0
    %40 = vperm.xlu0 %39, %v27
    %v41 = vpop.permute.xlu0 %40
    %vm43 = vcmask 31744
    %v45 = vsel %vm43, %v21, 0
    %v48 = vsel %vm43, %v22, 0
    %v51 = vsel %vm43, %v23, 0
    %vm53 = vcmask 1043456
    %v55 = vsel %vm53, %v24, 0
    %57 = vmatprep.subr.mxu0 0.0
    %58 = vmatpush1.msra.mxu0 0.0
    %59 = vmatprep.subr.mxu0 0.0
    %60 = vmatpush1.msra.mxu0 0.0
    %61 = vmatprep.subr.mxu0 0.0
    %62 = vmatpush1.msra.mxu0 0.0
    %63 = vmatprep.subr.mxu0 0.0
    %64 = vmatpush1.msra.mxu0 0.0
    %65 = vmatprep.subr.mxu0 0.0
    %66 = vmatpush1.msra.mxu0 0.0
    %67 = vmatprep.subr.mxu0 0.0
    %68 = vmatpush1.msra.mxu0 0.0
    %69 = vmatprep.subr.mxu0 0.0
    %70 = vmatpush1.msra.mxu0 0.0
    %71 = vmatprep.subr.mxu0 0.0
    %72 = vmatpush1.msra.mxu0 0.0
    %73 = vmatprep.subr.mxu0 0.0
    %74 = vmatpush1.msra.mxu0 0.0
    %75 = vmatprep.subr.mxu0 0.0
    %76 = vmatpush1.msra.mxu0 0.0
    %77 = vmatprep.subr.mxu0 0.0
    %78 = vmatpush1.msra.mxu0 0.0
    %79 = vmatprep.subr.mxu0 0.0
    %80 = vmatpush1.msra.mxu0 0.0
    %81 = vmatprep.subr.mxu0 0.0
    %82 = vmatpush1.msra.mxu0 0.0
    %83 = vmatprep.subr.mxu0 0.0
    %84 = vmatpush1.msra.mxu0 0.0
    %85 = vmatprep.subr.mxu0 0.0
    %86 = vmatpush1.msra.mxu0 0.0
    %87 = vmatprep.subr.mxu0 0.0
    %88 = vmatpush1.msra.mxu0 %v55
    %89 = vmatprep.subr.mxu0 0.0
    %90 = vmatpush2.msra.mxu0 0.0
    %91 = vmatprep.subr.mxu0 0.0
    %92 = vmatpush2.msra.mxu0 0.0
    %93 = vmatprep.subr.mxu0 0.0
    %94 = vmatpush2.msra.mxu0 0.0
    %95 = vmatprep.subr.mxu0 0.0
    %96 = vmatpush2.msra.mxu0 0.0
    %97 = vmatprep.subr.mxu0 0.0
    %98 = vmatpush2.msra.mxu0 0.0
    %99 = vmatprep.subr.mxu0 0.0
    %100 = vmatpush2.msra.mxu0 0.0
    %101 = vmatprep.subr.mxu0 0.0
    %102 = vmatpush2.msra.mxu0 0.0
    %103 = vmatprep.subr.mxu0 0.0
    %104 = vmatpush2.msra.mxu0 0.0
    %105 = vmatprep.subr.mxu0 0.0
    %106 = vmatpush2.msra.mxu0 0.0
    %107 = vmatprep.subr.mxu0 0.0
    %108 = vmatpush2.msra.mxu0 0.0
    %109 = vmatprep.subr.mxu0 0.0
    %110 = vmatpush2.msra.mxu0 0.0
    %111 = vmatprep.subr.mxu0 0.0
    %112 = vmatpush2.msra.mxu0 0.0
    %113 = vmatprep.subr.mxu0 0.0
    %114 = vmatpush2.msra.mxu0 0.0
    %115 = vmatprep.subr.mxu0 0.0
    %116 = vmatpush2.msra.mxu0 0.0
    %117 = vmatprep.subr.mxu0 0.0
    %118 = vmatpush2.msra.mxu0 0.0
    %119 = vmatprep.subr.mxu0 0.0
    %120 = vmatpush2.msra.mxu0 0.0
    %121 = vmatprep.mubr.f32.mxu0 0.0
    %122 = vmatmul.mubr.f32.gmra.mxu0 %v45
    %v123 = vpop.f32.mrf.mxu0
    %v124 = vadd.f32 %v31, %v123
    %v125 = vpop.f32.mrf.mxu0
    %126 = vmatprep.mubr.f32.mxu0 0.0
    %127 = vmatmul.mubr.f32.gmra.mxu0 %v48
    %v128 = vpop.f32.mrf.mxu0
    %v129 = vadd.f32 %v36, %v128
    %v130 = vpop.f32.mrf.mxu0
    %131 = vmatprep.mubr.f32.mxu0 0.0
    %132 = vmatmul.mubr.f32.gmra.mxu0 %v51
    %v133 = vpop.f32.mrf.mxu0
    %v134 = vadd.f32 %v41, %v133
    %v135 = vpop.f32.mrf.mxu0
    %136 = vdwg.mxu0
    %v137 = vmax.f32 %v124, 0.0
    %v138 = vmax.f32 %v129, 0.0
    %v139 = vmax.f32 %v134, 0.0
    %v140 = vld [vmem:[%s2] sm:$0xff]
    %v141 = vld [vmem:[%s2 + $0x8] sm:$0xff]
    %v142 = vld [vmem:[%s2 + $0x10] sm:$0xff]
    %s143 = scalar_lea.vmem %s4, 24
    %v144 = vld [vmem:[%s143] sm:$0xff]
    %v145 = vld [vmem:[%s143 + $0x8] sm:$0xff]
    %v146 = vld [vmem:[%s143 + $0x10] sm:$0xff]
    %148 = vset.pattern.permute.xlu0 0
    %149 = vperm.xlu0 %148, %v144
    %v150 = vpop.permute.xlu0 %149
    %153 = vset.pattern.permute.xlu0 0
    %154 = vperm.xlu0 %153, %v145
    %v155 = vpop.permute.xlu0 %154
    %158 = vset.pattern.permute.xlu0 0
    %159 = vperm.xlu0 %158, %v146
    %v160 = vpop.permute.xlu0 %159
    %vm162 = vcmask 195584
    %v164 = vsel %vm162, %v140, 0
    %v167 = vsel %vm162, %v141, 0
    %v170 = vsel %vm162, %v142, 0
    %172 = vmatprep.subr.mxu0 0.0
    %173 = vmatpush1.msra.mxu0 0.0
    %174 = vmatprep.subr.mxu0 0.0
    %175 = vmatpush1.msra.mxu0 0.0
    %176 = vmatprep.subr.mxu0 0.0
    %177 = vmatpush1.msra.mxu0 0.0
    %178 = vmatprep.subr.mxu0 0.0
    %179 = vmatpush1.msra.mxu0 0.0
    %180 = vmatprep.subr.mxu0 0.0
    %181 = vmatpush1.msra.mxu0 0.0
    %182 = vmatprep.subr.mxu0 0.0
    %183 = vmatpush1.msra.mxu0 0.0
    %184 = vmatprep.subr.mxu0 0.0
    %185 = vmatpush1.msra.mxu0 0.0
    %186 = vmatprep.subr.mxu0 0.0
    %187 = vmatpush1.msra.mxu0 0.0
    %188 = vmatprep.subr.mxu0 0.0
    %189 = vmatpush1.msra.mxu0 0.0
    %190 = vmatprep.subr.mxu0 0.0
    %191 = vmatpush1.msra.mxu0 0.0
    %192 = vmatprep.subr.mxu0 0.0
    %193 = vmatpush1.msra.mxu0 0.0
    %194 = vmatprep.subr.mxu0 0.0
    %195 = vmatpush1.msra.mxu0 0.0
    %196 = vmatprep.subr.mxu0 0.0
    %197 = vmatpush1.msra.mxu0 0.0
    %198 = vmatprep.subr.mxu0 0.0
    %199 = vmatpush1.msra.mxu0 %v139
    %200 = vmatprep.subr.mxu0 0.0
    %201 = vmatpush1.msra.mxu0 %v138
    %202 = vmatprep.subr.mxu0 0.0
    %203 = vmatpush1.msra.mxu0 %v137
    %204 = vmatprep.subr.mxu0 0.0
    %205 = vmatpush2.msra.mxu0 0.0
    %206 = vmatprep.subr.mxu0 0.0
    %207 = vmatpush2.msra.mxu0 0.0
    %208 = vmatprep.subr.mxu0 0.0
    %209 = vmatpush2.msra.mxu0 0.0
    %210 = vmatprep.subr.mxu0 0.0
    %211 = vmatpush2.msra.mxu0 0.0
    %212 = vmatprep.subr.mxu0 0.0
    %213 = vmatpush2.msra.mxu0 0.0
    %214 = vmatprep.subr.mxu0 0.0
    %215 = vmatpush2.msra.mxu0 0.0
    %216 = vmatprep.subr.mxu0 0.0
    %217 = vmatpush2.msra.mxu0 0.0
    %218 = vmatprep.subr.mxu0 0.0
    %219 = vmatpush2.msra.mxu0 0.0
    %220 = vmatprep.subr.mxu0 0.0
    %221 = vmatpush2.msra.mxu0 0.0
    %222 = vmatprep.subr.mxu0 0.0
    %223 = vmatpush2.msra.mxu0 0.0
    %224 = vmatprep.subr.mxu0 0.0
    %225 = vmatpush2.msra.mxu0 0.0
    %226 = vmatprep.subr.mxu0 0.0
    %227 = vmatpush2.msra.mxu0 0.0
    %228 = vmatprep.subr.mxu0 0.0
    %229 = vmatpush2.msra.mxu0 0.0
    %230 = vmatprep.subr.mxu0 0.0
    %231 = vmatpush2.msra.mxu0 0.0
    %232 = vmatprep.subr.mxu0 0.0
    %233 = vmatpush2.msra.mxu0 0.0
    %234 = vmatprep.subr.mxu0 0.0
    %235 = vmatpush2.msra.mxu0 0.0
    %236 = vmatprep.mubr.f32.mxu0 0.0
    %237 = vmatmul.mubr.f32.gmra.mxu0 %v164
    %v238 = vpop.f32.mrf.mxu0
    %v239 = vadd.f32 %v150, %v238
    %v240 = vpop.f32.mrf.mxu0
    %241 = vmatprep.mubr.f32.mxu0 0.0
    %242 = vmatmul.mubr.f32.gmra.mxu0 %v167
    %v243 = vpop.f32.mrf.mxu0
    %v244 = vadd.f32 %v155, %v243
    %v245 = vpop.f32.mrf.mxu0
    %246 = vmatprep.mubr.f32.mxu0 0.0
    %247 = vmatmul.mubr.f32.gmra.mxu0 %v170
    %v248 = vpop.f32.mrf.mxu0
    %v249 = vadd.f32 %v160, %v248
    %v250 = vpop.f32.mrf.mxu0
    %251 = vdwg.mxu0
    %v252 = vmax.f32 %v239, 0.0
    %v253 = vmax.f32 %v244, 0.0
    %v254 = vmax.f32 %v249, 0.0
    %s255 = scalar_lea.vmem %s2, 24
    %v256 = vld [vmem:[%s255] sm:$0xff]
    %v257 = vld [vmem:[%s255 + $0x8] sm:$0xff]
    %v258 = vld [vmem:[%s255 + $0x10] sm:$0xff]
    %s259 = scalar_lea.vmem %s4, 48
    %v260 = vld [vmem:[%s259] sm:$0xff]
    %v261 = vld [vmem:[%s259 + $0x8] sm:$0xff]
    %v262 = vld [vmem:[%s259 + $0x10] sm:$0xff]
    %264 = vset.pattern.permute.xlu0 0
    %265 = vperm.xlu0 %264, %v260
    %v266 = vpop.permute.xlu0 %265
    %269 = vset.pattern.permute.xlu0 0
    %270 = vperm.xlu0 %269, %v261
    %v271 = vpop.permute.xlu0 %270
    %274 = vset.pattern.permute.xlu0 0
    %275 = vperm.xlu0 %274, %v262
    %v276 = vpop.permute.xlu0 %275
    %v279 = vsel %vm162, %v256, 0
    %v282 = vsel %vm162, %v257, 0
    %v285 = vsel %vm162, %v258, 0
    %287 = vmatprep.subr.mxu0 0.0
    %288 = vmatpush1.msra.mxu0 0.0
    %289 = vmatprep.subr.mxu0 0.0
    %290 = vmatpush1.msra.mxu0 0.0
    %291 = vmatprep.subr.mxu0 0.0
    %292 = vmatpush1.msra.mxu0 0.0
    %293 = vmatprep.subr.mxu0 0.0
    %294 = vmatpush1.msra.mxu0 0.0
    %295 = vmatprep.subr.mxu0 0.0
    %296 = vmatpush1.msra.mxu0 0.0
    %297 = vmatprep.subr.mxu0 0.0
    %298 = vmatpush1.msra.mxu0 0.0
    %299 = vmatprep.subr.mxu0 0.0
    %300 = vmatpush1.msra.mxu0 0.0
    %301 = vmatprep.subr.mxu0 0.0
    %302 = vmatpush1.msra.mxu0 0.0
    %303 = vmatprep.subr.mxu0 0.0
    %304 = vmatpush1.msra.mxu0 0.0
    %305 = vmatprep.subr.mxu0 0.0
    %306 = vmatpush1.msra.mxu0 0.0
    %307 = vmatprep.subr.mxu0 0.0
    %308 = vmatpush1.msra.mxu0 0.0
    %309 = vmatprep.subr.mxu0 0.0
    %310 = vmatpush1.msra.mxu0 0.0
    %311 = vmatprep.subr.mxu0 0.0
    %312 = vmatpush1.msra.mxu0 0.0
    %313 = vmatprep.subr.mxu0 0.0
    %314 = vmatpush1.msra.mxu0 %v254
    %315 = vmatprep.subr.mxu0 0.0
    %316 = vmatpush1.msra.mxu0 %v253
    %317 = vmatprep.subr.mxu0 0.0
    %318 = vmatpush1.msra.mxu0 %v252
    %319 = vmatprep.subr.mxu0 0.0
    %320 = vmatpush2.msra.mxu0 0.0
    %321 = vmatprep.subr.mxu0 0.0
    %322 = vmatpush2.msra.mxu0 0.0
    %323 = vmatprep.subr.mxu0 0.0
    %324 = vmatpush2.msra.mxu0 0.0
    %325 = vmatprep.subr.mxu0 0.0
    %326 = vmatpush2.msra.mxu0 0.0
    %327 = vmatprep.subr.mxu0 0.0
    %328 = vmatpush2.msra.mxu0 0.0
    %329 = vmatprep.subr.mxu0 0.0
    %330 = vmatpush2.msra.mxu0 0.0
    %331 = vmatprep.subr.mxu0 0.0
    %332 = vmatpush2.msra.mxu0 0.0
    %333 = vmatprep.subr.mxu0 0.0
    %334 = vmatpush2.msra.mxu0 0.0
    %335 = vmatprep.subr.mxu0 0.0
    %336 = vmatpush2.msra.mxu0 0.0
    %337 = vmatprep.subr.mxu0 0.0
    %338 = vmatpush2.msra.mxu0 0.0
    %339 = vmatprep.subr.mxu0 0.0
    %340 = vmatpush2.msra.mxu0 0.0
    %341 = vmatprep.subr.mxu0 0.0
    %342 = vmatpush2.msra.mxu0 0.0
    %343 = vmatprep.subr.mxu0 0.0
    %344 = vmatpush2.msra.mxu0 0.0
    %345 = vmatprep.subr.mxu0 0.0
    %346 = vmatpush2.msra.mxu0 0.0
    %347 = vmatprep.subr.mxu0 0.0
    %348 = vmatpush2.msra.mxu0 0.0
    %349 = vmatprep.subr.mxu0 0.0
    %350 = vmatpush2.msra.mxu0 0.0
    %351 = vmatprep.mubr.f32.mxu0 0.0
    %352 = vmatmul.mubr.f32.gmra.mxu0 %v279
    %v353 = vpop.f32.mrf.mxu0
    %v354 = vadd.f32 %v266, %v353
    %v355 = vpop.f32.mrf.mxu0
    %356 = vmatprep.mubr.f32.mxu0 0.0
    %357 = vmatmul.mubr.f32.gmra.mxu0 %v282
    %v358 = vpop.f32.mrf.mxu0
    %v359 = vadd.f32 %v271, %v358
    %v360 = vpop.f32.mrf.mxu0
    %361 = vmatprep.mubr.f32.mxu0 0.0
    %362 = vmatmul.mubr.f32.gmra.mxu0 %v285
    %v363 = vpop.f32.mrf.mxu0
    %v364 = vadd.f32 %v276, %v363
    %v365 = vpop.f32.mrf.mxu0
    %366 = vdwg.mxu0
    %v367 = vmax.f32 %v354, 0.0
    %v368 = vmax.f32 %v359, 0.0
    %v369 = vmax.f32 %v364, 0.0
    %s370 = scalar_lea.vmem %s4, 72
    %v371 = vld [vmem:[%s370] sm:$0xff]
    %v372 = vld [vmem:[%s3] sm:$0x1]
    %374 = vset.pattern.permute.xlu0 0
    %375 = vperm.xlu0 %374, %v371
    %v376 = vpop.permute.xlu0 %375
    %v379 = vsel %vm162, %v372, 0
    %381 = vmatprep.subr.mxu0 0.0
    %382 = vmatpush1.msra.mxu0 0.0
    %383 = vmatprep.subr.mxu0 0.0
    %384 = vmatpush1.msra.mxu0 0.0
    %385 = vmatprep.subr.mxu0 0.0
    %386 = vmatpush1.msra.mxu0 0.0
    %387 = vmatprep.subr.mxu0 0.0
    %388 = vmatpush1.msra.mxu0 0.0
    %389 = vmatprep.subr.mxu0 0.0
    %390 = vmatpush1.msra.mxu0 0.0
    %391 = vmatprep.subr.mxu0 0.0
    %392 = vmatpush1.msra.mxu0 0.0
    %393 = vmatprep.subr.mxu0 0.0
    %394 = vmatpush1.msra.mxu0 0.0
    %395 = vmatprep.subr.mxu0 0.0
    %396 = vmatpush1.msra.mxu0 0.0
    %397 = vmatprep.subr.mxu0 0.0
    %398 = vmatpush1.msra.mxu0 0.0
    %399 = vmatprep.subr.mxu0 0.0
    %400 = vmatpush1.msra.mxu0 0.0
    %401 = vmatprep.subr.mxu0 0.0
    %402 = vmatpush1.msra.mxu0 0.0
    %403 = vmatprep.subr.mxu0 0.0
    %404 = vmatpush1.msra.mxu0 0.0
    %405 = vmatprep.subr.mxu0 0.0
    %406 = vmatpush1.msra.mxu0 0.0
    %407 = vmatprep.subr.mxu0 0.0
    %408 = vmatpush1.msra.mxu0 %v369
    %409 = vmatprep.subr.mxu0 0.0
    %410 = vmatpush1.msra.mxu0 %v368
    %411 = vmatprep.subr.mxu0 0.0
    %412 = vmatpush1.msra.mxu0 %v367
    %413 = vmatprep.subr.mxu0 0.0
    %414 = vmatpush2.msra.mxu0 0.0
    %415 = vmatprep.subr.mxu0 0.0
    %416 = vmatpush2.msra.mxu0 0.0
    %417 = vmatprep.subr.mxu0 0.0
    %418 = vmatpush2.msra.mxu0 0.0
    %419 = vmatprep.subr.mxu0 0.0
    %420 = vmatpush2.msra.mxu0 0.0
    %421 = vmatprep.subr.mxu0 0.0
    %422 = vmatpush2.msra.mxu0 0.0
    %423 = vmatprep.subr.mxu0 0.0
    %424 = vmatpush2.msra.mxu0 0.0
    %425 = vmatprep.subr.mxu0 0.0
    %426 = vmatpush2.msra.mxu0 0.0
    %427 = vmatprep.subr.mxu0 0.0
    %428 = vmatpush2.msra.mxu0 0.0
    %429 = vmatprep.subr.mxu0 0.0
    %430 = vmatpush2.msra.mxu0 0.0
    %431 = vmatprep.subr.mxu0 0.0
    %432 = vmatpush2.msra.mxu0 0.0
    %433 = vmatprep.subr.mxu0 0.0
    %434 = vmatpush2.msra.mxu0 0.0
    %435 = vmatprep.subr.mxu0 0.0
    %436 = vmatpush2.msra.mxu0 0.0
    %437 = vmatprep.subr.mxu0 0.0
    %438 = vmatpush2.msra.mxu0 0.0
    %439 = vmatprep.subr.mxu0 0.0
    %440 = vmatpush2.msra.mxu0 0.0
    %441 = vmatprep.subr.mxu0 0.0
    %442 = vmatpush2.msra.mxu0 0.0
    %443 = vmatprep.subr.mxu0 0.0
    %444 = vmatpush2.msra.mxu0 0.0
    %445 = vmatprep.mubr.f32.mxu0 0.0
    %446 = vmatmul.mubr.f32.gmra.mxu0 %v379
    %v447 = vpop.f32.mrf.mxu0
    %v448 = vadd.f32 %v376, %v447
    %v449 = vpop.f32.mrf.mxu0
    %450 = vdwg.mxu0
    %451 = vst [vmem:[#allocation2] sm:$0x1] %v448
    // Predicated region
    $region22: #{tpu_custom_call.1} parent=1 // pred_check
      _
    $region23: #{tpu_custom_call.1} parent=1 // pred_check_branch
      %453 = sbr.rel (0) target = $region25
    $region24: #{tpu_custom_call.1} parent=1 // pred_region
      %s455 = ssub.s32 16, 16
      %456 = vsyncadd [#allocation3], %s455
      %s458 = sshll.u32 [#allocation2], 4
      %s459 = int_to_ptr.vmem [resolvable:$true] %s458
      %461 = dma.vmem_to_hbm [thread:$0]  %s459, 16, %s5, [#allocation3]
    $region25: #{tpu_custom_call.1} parent=1 // pred_fallthru
      _
    // Predicated region
    $region26: #{tpu_custom_call.1} parent=1 // pred_check
      _
    $region27: #{tpu_custom_call.1} parent=1 // pred_check_branch
      %463 = sbr.rel (0) target = $region29
    $region28: #{tpu_custom_call.1} parent=1 // pred_region
      %464 = dma.done [#allocation3], 16
    $region29: #{tpu_custom_call.1} parent=1 // pred_fallthru
      _
    %465 = vsyncpa [#allocation3], 1

</llo_original>
